<compile_context>
chip_gen: v7x
topology: tpu7x:2x2x1
jax: 0.10.0
libtpu: 0.0.40
codegen_flags: <defaults>
</compile_context>

<pallas_src>
import jax
import jax.numpy as jnp
from jax.experimental import pallas as pl
from jax.experimental.pallas import tpu as pltpu


def _round_hidden(hidden_dim: int, multiple_of: int) -> int:
    # Mirrors the PyTorch __init__ hidden-dim computation.
    hidden_dim = int(2 * hidden_dim / 3)
    hidden_dim = hidden_dim + multiple_of - 1
    return multiple_of * (hidden_dim // multiple_of)


def _round_up(x: int, m: int) -> int:
    return ((x + m - 1) // m) * m


def _pick_h_tile(hidden: int, max_th: int) -> int:
    """Largest 256/128-aligned divisor of `hidden` not exceeding max_th."""
    if hidden <= max_th:
        return hidden
    for cand in (2048, 1792, 1536, 1280, 1024, 768, 512, 384, 256, 128):
        if cand <= max_th and hidden % cand == 0:
            return cand
    # Fallback: no aligned divisor found -> keep H untiled (full-dim block is
    # always layout-legal).
    return hidden


def _vmem_limit_bytes() -> int:
    """Generation-aware scoped-VMEM budget with ~15% headroom."""
    cap = 128 * 1024 * 1024
    try:
        info = pltpu.get_tpu_info()
        cap = int(getattr(info, "vmem_capacity_bytes", cap) or cap)
    except Exception:
        pass
    # ~54 MiB on v7x (64 MiB/TC), capped at ~108 MiB on v5e/v6e (128 MiB).
    return max(32 * 1024 * 1024, min(int(cap * 0.85), 108 * 1024 * 1024))


def _ffn_kernel(x_ref, w1_ref, w3_ref, w2_ref, o_ref, acc_ref):
    # x_ref:   (TM, D)  input row tile (re-used across the H axis; block index
    #                    is h-invariant so Pallas does not re-DMA it)
    # w1_ref:  (D, TH)  W1^T chunk, bf16
    # w3_ref:  (D, TH)  W3^T chunk, bf16
    # w2_ref:  (TH, D)  W2^T chunk, bf16
    # o_ref:   (TM, D)  output row tile
    # acc_ref: (TM, D)  f32 accumulator, persists across the H (reduction) axis
    h_idx = pl.program_id(1)

    @pl.when(h_idx == 0)
    def _():
        acc_ref[...] = jnp.zeros_like(acc_ref)

    x = x_ref[...].astype(jnp.bfloat16)

    # Gate / up projections for this H chunk, f32 accumulation on the MXU.
    h1 = jnp.dot(x, w1_ref[...], preferred_element_type=jnp.float32)  # (TM, TH)
    h3 = jnp.dot(x, w3_ref[...], preferred_element_type=jnp.float32)  # (TM, TH)

    # SwiGLU gating in f32 (sigmoid on the EUP slot), cast fused into the
    # multiply result -> single bf16 store of the gated intermediate.
    gated = (h1 * jax.nn.sigmoid(h1) * h3).astype(jnp.bfloat16)

    # Partial down-projection accumulated into the f32 scratch.
    acc_ref[...] += jnp.dot(gated, w2_ref[...], preferred_element_type=jnp.float32)

    @pl.when(h_idx == pl.num_programs(1) - 1)
    def _():
        o_ref[...] = acc_ref[...].astype(o_ref.dtype)


def prepare_ffn_weights(w1, w2, w3, param_dtype=jnp.bfloat16):
    """One-time weight prep (do at model-load time, NOT per forward call).

    Args (PyTorch nn.Linear layout, (out, in)):
      w1: (hidden, dim), w2: (dim, hidden), w3: (hidden, dim)
    Returns:
      w1t: (dim, hidden), w3t: (dim, hidden), w2t: (hidden, dim), cast to param_dtype.
    """
    return (
        w1.T.astype(param_dtype),
        w3.T.astype(param_dtype),
        w2.T.astype(param_dtype),
    )


def feed_forward(x, w1t, w3t, w2t, *, block_m: int = 256, block_h: int = 2048):
    """Pallas SwiGLU feed-forward.

    Args:
      x:   (batch, seq, dim) f32 or bf16 activations.
      w1t: (dim, hidden)   from prepare_ffn_weights
      w3t: (dim, hidden)   from prepare_ffn_weights
      w2t: (hidden, dim)   from prepare_ffn_weights
    Returns:
      (batch, seq, dim), same dtype as x.
    """
    b, s, d = x.shape
    hidden = w1t.shape[1]
    assert w1t.shape == (d, hidden)
    assert w3t.shape == (d, hidden)
    assert w2t.shape == (hidden, d)

    m = b * s
    x2d = x.reshape(m, d)

    # Row-tile size: multiple of 8 (sublane), capped at block_m.  For small M
    # (decode-size batches) force >=2 row tiles so the "parallel" axis can be
    # split across v7x's two TensorCores and the pipeline has work to overlap.
    tm = min(block_m, _round_up(m, 8))
    if m > 8 and _round_up(m, tm) // tm < 2:
        tm = _round_up((m + 1) // 2, 8)
    m_pad = _round_up(m, tm)
    if m_pad != m:
        # SwiGLU of zero rows is zero; padded rows are sliced off afterwards.
        x2d = jnp.pad(x2d, ((0, m_pad - m), (0, 0)))

    # Hidden-dim tile: 128/256-aligned divisor of hidden (or full hidden).
    th = _pick_h_tile(hidden, block_h)
    assert hidden % th == 0

    grid = (m_pad // tm, hidden // th)

    # Advisory cost hint for XLA scheduling of neighbouring ops.
    flops = 6 * m * d * hidden + 4 * m * hidden
    transcendentals = m * hidden
    bytes_accessed = (
        m_pad * d * x2d.dtype.itemsize          # x read
        + m_pad * d * x.dtype.itemsize          # out write
        + 3 * d * hidden * 2 * grid[0]          # bf16 weights, re-streamed per M tile
    )

    out2d = pl.pallas_call(
        _ffn_kernel,
        out_shape=jax.ShapeDtypeStruct((m_pad, d), x.dtype),
        grid_spec=pltpu.PrefetchScalarGridSpec(
            num_scalar_prefetch=0,
            grid=grid,
            in_specs=[
                # x tile: marches down M, invariant along H (no re-fetch).
                pl.BlockSpec((tm, d), lambda i, h: (i, 0)),
                # Weight chunks: march down H, invariant along M; default
                # double-buffering overlaps their DMA with MXU work.
                pl.BlockSpec((d, th), lambda i, h: (0, h)),
                pl.BlockSpec((d, th), lambda i, h: (0, h)),
                pl.BlockSpec((th, d), lambda i, h: (h, 0)),
            ],
            out_specs=pl.BlockSpec((tm, d), lambda i, h: (i, 0)),
            scratch_shapes=[pltpu.VMEM((tm, d), jnp.float32)],
        ),
        compiler_params=pltpu.CompilerParams(
            # M tiles are independent -> shard across TensorCores on v7x;
            # H is a reduction into the VMEM accumulator -> arbitrary.
            dimension_semantics=("parallel", "arbitrary"),
            vmem_limit_bytes=_vmem_limit_bytes(),
        ),
        cost_estimate=pl.CostEstimate(
            flops=flops,
            transcendentals=transcendentals,
            bytes_accessed=bytes_accessed,
        ),
    )(x2d, w1t, w3t, w2t)

    if m_pad != m:
        out2d = out2d[:m]
    return out2d.reshape(b, s, d)


if __name__ == "__main__":
    # Small shapes consistent with the module (TPU-friendly: dim multiple of 128).
    batch, seq = 2, 8
    dim = 128
    hidden_dim_arg = 384
    multiple_of = 128
    hidden = _round_hidden(hidden_dim_arg, multiple_of)  # -> 256

    key = jax.random.PRNGKey(0)
    kx, k1, k2, k3 = jax.random.split(key, 4)

    x = jax.random.normal(kx, (batch, seq, dim), dtype=jnp.float32)
    # Deterministic synthetic weights in PyTorch nn.Linear layout (out, in).
    w1 = jax.random.normal(k1, (hidden, dim), dtype=jnp.float32) * 0.02
    w2 = jax.random.normal(k2, (dim, hidden), dtype=jnp.float32) * 0.02
    w3 = jax.random.normal(k3, (hidden, dim), dtype=jnp.float32) * 0.02

    # One-time weight prep (transpose + bf16 cast), then run the kernel.
    # block_h=128 deliberately forces 2 H tiles here to exercise the
    # accumulator (reduction) path; production default is block_h=2048.
    w1t, w3t, w2t = prepare_ffn_weights(w1, w2, w3)
    out = feed_forward(x, w1t, w3t, w2t, block_h=128)
    out = jax.block_until_ready(out)

    # Reference check in plain JAX f32 (same math as the PyTorch forward;
    # dropout is stored on the module but never applied in forward()).
    h1 = x @ w1.T
    ref = ((h1 * jax.nn.sigmoid(h1)) * (x @ w3.T)) @ w2.T
    assert out.shape == (batch, seq, dim)
    assert jnp.allclose(out, ref, atol=1e-2, rtol=3e-2), (
        float(jnp.max(jnp.abs(out - ref)))
    )

    print("KERNEL_OK")
</pallas_src>

<mosaic_0001>
module attributes {stable_mosaic.version = 11 : i64} {
  func.func @_ffn_kernel(%arg0: i32, %arg1: i32, %arg2: memref<8x128xf32, #tpu.memory_space<vmem>>, %arg3: memref<128x128xbf16, #tpu.memory_space<vmem>>, %arg4: memref<128x128xbf16, #tpu.memory_space<vmem>>, %arg5: memref<128x128xbf16, #tpu.memory_space<vmem>>, %arg6: memref<8x128xf32, #tpu.memory_space<vmem>>, %arg7: memref<8x128xf32, #tpu.memory_space<vmem>>) attributes {dimension_semantics = [#tpu.dimension_semantics<parallel>, #tpu.dimension_semantics<arbitrary>], iteration_bounds = array<i64: 2, 2>, scalar_prefetch = 0 : i64, scratch_operands = 1 : i64, tpu.core_type = #tpu.core_type<tc>, window_params = [{transform_indices = @transform_0, window_bounds = array<i64: 8, 128>}, {transform_indices = @transform_1, window_bounds = array<i64: 128, 128>}, {transform_indices = @transform_2, window_bounds = array<i64: 128, 128>}, {transform_indices = @transform_3, window_bounds = array<i64: 128, 128>}, {transform_indices = @transform_4, window_bounds = array<i64: 8, 128>}]} {
    %c0_i32 = arith.constant 0 : i32
    %0 = arith.cmpi eq, %arg1, %c0_i32 : i32
    %1 = arith.extui %0 : i1 to i32
    %c0_i32_0 = arith.constant 0 : i32
    %2 = arith.cmpi ne, %1, %c0_i32_0 : i32
    scf.if %2 {
      %cst_16 = arith.constant 0.000000e+00 : f32
      %25 = vector.broadcast %cst_16 : f32 to vector<8x128xf32>
      %c0_17 = arith.constant 0 : index
      %c0_18 = arith.constant 0 : index
      %26 = vector.load %arg7[%c0_17, %c0_18] : memref<8x128xf32, #tpu.memory_space<vmem>>, vector<8x128xf32>
      tpu.vector_store %arg7[%c0_17, %c0_18], %25 {strides = array<i32>} : memref<8x128xf32, #tpu.memory_space<vmem>>, vector<8x128xf32>,
    } else {
    }
    %c0 = arith.constant 0 : index
    %c0_1 = arith.constant 0 : index
    %3 = vector.load %arg2[%c0, %c0_1] : memref<8x128xf32, #tpu.memory_space<vmem>>, vector<8x128xf32>
    %4 = arith.truncf %3 : vector<8x128xf32> to vector<8x128xbf16>
    %c0_2 = arith.constant 0 : index
    %c0_3 = arith.constant 0 : index
    %5 = vector.load %arg3[%c0_2, %c0_3] : memref<128x128xbf16, #tpu.memory_space<vmem>>, vector<128x128xbf16>
    %cst = arith.constant dense<0.000000e+00> : vector<8x128xf32>
    %6 = tpu.matmul %4, %5, %cst {dimension_numbers = #tpu.dot_dimension_numbers<[1], [0], [0], [1], [0, 0, 1, 1], [], []>} : vector<8x128xbf16>, vector<128x128xbf16>, vector<8x128xf32> -> vector<8x128xf32>
    %c0_4 = arith.constant 0 : index
    %c0_5 = arith.constant 0 : index
    %7 = vector.load %arg4[%c0_4, %c0_5] : memref<128x128xbf16, #tpu.memory_space<vmem>>, vector<128x128xbf16>
    %cst_6 = arith.constant dense<0.000000e+00> : vector<8x128xf32>
    %8 = tpu.matmul %4, %7, %cst_6 {dimension_numbers = #tpu.dot_dimension_numbers<[1], [0], [0], [1], [0, 0, 1, 1], [], []>} : vector<8x128xbf16>, vector<128x128xbf16>, vector<8x128xf32> -> vector<8x128xf32>
    %9 = arith.negf %6 : vector<8x128xf32>
    %10 = math.exp %9 : vector<8x128xf32>
    %cst_7 = arith.constant 1.000000e+00 : f32
    %11 = vector.broadcast %cst_7 : f32 to vector<8x128xf32>
    %12 = arith.addf %11, %10 : vector<8x128xf32>
    %13 = arith.divf %11, %12 : vector<8x128xf32>
    %14 = arith.mulf %6, %13 : vector<8x128xf32>
    %15 = arith.mulf %14, %8 : vector<8x128xf32>
    %16 = arith.truncf %15 : vector<8x128xf32> to vector<8x128xbf16>
    %c0_8 = arith.constant 0 : index
    %c0_9 = arith.constant 0 : index
    %17 = vector.load %arg7[%c0_8, %c0_9] : memref<8x128xf32, #tpu.memory_space<vmem>>, vector<8x128xf32>
    %c0_10 = arith.constant 0 : index
    %c0_11 = arith.constant 0 : index
    %18 = vector.load %arg5[%c0_10, %c0_11] : memref<128x128xbf16, #tpu.memory_space<vmem>>, vector<128x128xbf16>
    %cst_12 = arith.constant dense<0.000000e+00> : vector<8x128xf32>
    %19 = tpu.matmul %16, %18, %cst_12 {dimension_numbers = #tpu.dot_dimension_numbers<[1], [0], [0], [1], [0, 0, 1, 1], [], []>} : vector<8x128xbf16>, vector<128x128xbf16>, vector<8x128xf32> -> vector<8x128xf32>
    %20 = arith.addf %17, %19 : vector<8x128xf32>
    %c0_13 = arith.constant 0 : index
    %c0_14 = arith.constant 0 : index
    %21 = vector.load %arg7[%c0_13, %c0_14] : memref<8x128xf32, #tpu.memory_space<vmem>>, vector<8x128xf32>
    tpu.vector_store %arg7[%c0_13, %c0_14], %20 {strides = array<i32>} : memref<8x128xf32, #tpu.memory_space<vmem>>, vector<8x128xf32>,
    %c1_i32 = arith.constant 1 : i32
    %22 = arith.cmpi eq, %arg1, %c1_i32 : i32
    %23 = arith.extui %22 : i1 to i32
    %c0_i32_15 = arith.constant 0 : i32
    %24 = arith.cmpi ne, %23, %c0_i32_15 : i32
    scf.if %24 {
      %c0_16 = arith.constant 0 : index
      %c0_17 = arith.constant 0 : index
      %25 = vector.load %arg7[%c0_16, %c0_17] : memref<8x128xf32, #tpu.memory_space<vmem>>, vector<8x128xf32>
      %c0_18 = arith.constant 0 : index
      %c0_19 = arith.constant 0 : index
      %26 = vector.load %arg6[%c0_18, %c0_19] : memref<8x128xf32, #tpu.memory_space<vmem>>, vector<8x128xf32>
      tpu.vector_store %arg6[%c0_18, %c0_19], %25 {strides = array<i32>} : memref<8x128xf32, #tpu.memory_space<vmem>>, vector<8x128xf32>,
    } else {
    }
    return
  }
  func.func @transform_0(%arg0: i32, %arg1: i32) -> (i32, i32) {
    %c0_i32 = arith.constant 0 : i32
    %c0_i32_0 = arith.constant 0 : i32
    return %arg0, %c0_i32 : i32, i32
  }
  func.func @transform_1(%arg0: i32, %arg1: i32) -> (i32, i32) {
    %c0_i32 = arith.constant 0 : i32
    %c0_i32_0 = arith.constant 0 : i32
    return %c0_i32, %arg1 : i32, i32
  }
  func.func @transform_2(%arg0: i32, %arg1: i32) -> (i32, i32) {
    %c0_i32 = arith.constant 0 : i32
    %c0_i32_0 = arith.constant 0 : i32
    return %c0_i32, %arg1 : i32, i32
  }
  func.func @transform_3(%arg0: i32, %arg1: i32) -> (i32, i32) {
    %c0_i32 = arith.constant 0 : i32
    %c0_i32_0 = arith.constant 0 : i32
    return %arg1, %c0_i32 : i32, i32
  }
  func.func @transform_4(%arg0: i32, %arg1: i32) -> (i32, i32) {
    %c0_i32 = arith.constant 0 : i32
    %c0_i32_0 = arith.constant 0 : i32
    return %arg0, %c0_i32 : i32, i32
  }
}

</mosaic_0001>

<llo_original>
// kernel: tpu_custom_call.1
$region0: #{tpu_custom_call.1}
  #allocation0 [shape = 'u32[]', space=smem, size = 0x4, offset = 0x4, fixed_abs, tag = 'smem constant byte address 0x4 - core index']
  #allocation1 [shape = 'u32[144,128]{1,0:T(1,128)}', space=vmem, size = 0x12000, scoped, tag = 'internal scratch']
  #allocation2 [shape = 'f32[8,128]{1,0:T(8,128)}', space=vmem, size = 0x1000, scoped, tag = 'scratch operand']
  %s0 = inlined_call_operand.hbm [shape: f32[16,128], index: 0, kind: input, shape index: {}]
  %s1 = inlined_call_operand.hbm [shape: bf16[128,256], index: 1, kind: input, shape index: {}]
  %s2 = inlined_call_operand.hbm [shape: bf16[128,256], index: 2, kind: input, shape index: {}]
  %s3 = inlined_call_operand.hbm [shape: bf16[256,128], index: 3, kind: input, shape index: {}]
  %s4 = inlined_call_operand.hbm [shape: f32[16,128], index: 4, kind: output, shape index: {}]
  %s5 = sld [smem:[#allocation0]]
  $region73: #{tpu_custom_call.1} parent=0
    _
  %s7 = ssub.s32 1, %s5
  %s8 = scalar_select 0, %s7, %s5
  $region1: #{tpu_custom_call.1} parent=0
    #allocation3 [shape = 'u8[8192]{0}', space=vmem, size = 0x2000, scoped, tag = 'input window, operand 0']
    #allocation4 [shape = 's32[2]{0}', space=sflag, size = 0x8, scoped, tag = 'scoped memory for tpu_custom_call.1']
    #allocation5 [shape = 's32[2]{0}', space=sflag, size = 0x8, scoped, tag = 'scoped memory for tpu_custom_call.1']
    #allocation6 [shape = 'u8[65536]{0}', space=vmem, size = 0x10000, scoped, tag = 'input window, operand 1']
    #allocation7 [shape = 's32[2]{0}', space=sflag, size = 0x8, scoped, tag = 'scoped memory for tpu_custom_call.1']
    #allocation8 [shape = 'u8[65536]{0}', space=vmem, size = 0x10000, scoped, tag = 'input window, operand 2']
    #allocation9 [shape = 'u8[65536]{0}', space=vmem, size = 0x10000, scoped, tag = 'input window, operand 3']
    #allocation10 [shape = 's32[2]{0}', space=sflag, size = 0x8, scoped, tag = 'scoped memory for tpu_custom_call.1']
    #allocation11 [shape = 'u8[8192]{0}', space=vmem, size = 0x2000, scoped, tag = 'output window, operand 0']
    %9 = vsyncpa [#allocation4], 0
    %s10 = scalar_lea.sflag [#allocation4], 1
    %11 = vsyncpa %s10, 0
    %12 = vsyncpa [#allocation7], 0
    %s13 = scalar_lea.sflag [#allocation7], 1
    %14 = vsyncpa %s13, 0
    %15 = vsyncpa [#allocation10], 0
    %s16 = scalar_lea.sflag [#allocation10], 1
    %17 = vsyncpa %s16, 0
    %18 = vsyncpa [#allocation5], 0
    %s19 = scalar_lea.sflag [#allocation5], 1
    %20 = vsyncpa %s19, 0
    loop: start=0, step=1, limit=6
    $region2: #{tpu_custom_call.1} parent=1 // loop_pre_header
      _
    $region3: #{tpu_custom_call.1} parent=1 // loop_header
      %s22 = sphi 0, %s26
      %p23 = scmp.ge.s32.totalorder %s22, 6
      %s29 = sphi 0, %s41
      %s30 = sphi 0, %s37
      %s31 = sphi 0, %s29
      %s32 = sphi 0, %s30
      %s33 = sphi 0, %s31
      %s34 = sphi 0, %s32
      %s44 = sphi 0, %s46
      %s47 = sphi 0, %s44
      %s48 = sphi 0, %s47
      %s64 = sphi 0, %s48
      %s70 = sphi 0, %s72
      %s73 = sphi 0, %s70
      %s74 = sphi 0, %s73
      %s90 = sphi 0, %s74
      %s96 = sphi 0, %s98
      %s99 = sphi 0, %s96
      %s100 = sphi 0, %s99
      %s116 = sphi 0, %s100
      %s122 = sphi 0, %s124
      %s125 = sphi 0, %s122
      %s126 = sphi 0, %s125
      %s142 = sphi 0, %s126
      %s148 = sphi 0, %s150
      %s151 = sphi 0, %s148
      %s152 = sphi 0, %s151
      %s168 = sphi 0, %s152
    $region4: #{tpu_custom_call.1} parent=1 // loop_header_branch
      %25 = sbr.rel (%p23) target = $region8
    $region5: #{tpu_custom_call.1} parent=1 // loop_body
      %s27 = ssub.s32 %s22, 1
      %s28 = ssub.s32 %s22, 2
      %s35 = sadd.s32 1, %s30
      %p36 = scmp.ge.s32.totalorder %s35, 2
      %s37 = scalar_select %p36, 0, %s35
      %s38 = sadd.s32 1, %s29
      %s39 = scalar_select %p36, %s38, %s29
      %p40 = scmp.ge.s32.totalorder %s39, 2
      %s41 = scalar_select %p40, 0, %s39
      %s42 = ssub.s32 %s29, %s41
      %p43 = scmp.eq.s32.totalorder %s42, 0
      %s45 = sadd.s32 %s44, 1
      %s46 = scalar_select %p43, %s44, %s45
      %p49 = pneg %p43
      %p50 = scmp.eq.s32.totalorder %s22, 3
      %p51 = por %p49, %p50
      %p52 = scmp.ne.s32.totalorder %s44, %s47
      %p53 = scmp.eq.s32.totalorder %s22, 0
      %p54 = por %p52, %p53
      %p55 = scmp.ne.s32.totalorder %s44, %s47
      %p56 = scmp.eq.s32.totalorder %s27, 3
      %p57 = por %p55, %p56
      %p58 = scmp.ne.s32.totalorder %s47, %s48
      %p59 = scmp.eq.s32.totalorder %s27, 0
      %p60 = por %p58, %p59
      %p61 = scmp.ne.s32.totalorder %s47, %s48
      %p62 = scmp.eq.s32.totalorder %s28, 3
      %p63 = por %p61, %p62
      %p65 = scmp.ne.s32.totalorder %s48, %s64
      %p66 = scmp.eq.s32.totalorder %s28, 0
      %p67 = por %p65, %p66
      %s68 = ssub.s32 %s30, %s37
      %p69 = scmp.eq.s32.totalorder %s68, 0
      %s71 = sadd.s32 %s70, 1
      %s72 = scalar_select %p69, %s70, %s71
      %p75 = pneg %p69
      %p76 = scmp.eq.s32.totalorder %s22, 3
      %p77 = por %p75, %p76
      %p78 = scmp.ne.s32.totalorder %s70, %s73
      %p79 = scmp.eq.s32.totalorder %s22, 0
      %p80 = por %p78, %p79
      %p81 = scmp.ne.s32.totalorder %s70, %s73
      %p82 = scmp.eq.s32.totalorder %s27, 3
      %p83 = por %p81, %p82
      %p84 = scmp.ne.s32.totalorder %s73, %s74
      %p85 = scmp.eq.s32.totalorder %s27, 0
      %p86 = por %p84, %p85
      %p87 = scmp.ne.s32.totalorder %s73, %s74
      %p88 = scmp.eq.s32.totalorder %s28, 3
      %p89 = por %p87, %p88
      %p91 = scmp.ne.s32.totalorder %s74, %s90
      %p92 = scmp.eq.s32.totalorder %s28, 0
      %p93 = por %p91, %p92
      %s94 = ssub.s32 %s30, %s37
      %p95 = scmp.eq.s32.totalorder %s94, 0
      %s97 = sadd.s32 %s96, 1
      %s98 = scalar_select %p95, %s96, %s97
      %p101 = pneg %p95
      %p102 = scmp.eq.s32.totalorder %s22, 3
      %p103 = por %p101, %p102
      %p104 = scmp.ne.s32.totalorder %s96, %s99
      %p105 = scmp.eq.s32.totalorder %s22, 0
      %p106 = por %p104, %p105
      %p107 = scmp.ne.s32.totalorder %s96, %s99
      %p108 = scmp.eq.s32.totalorder %s27, 3
      %p109 = por %p107, %p108
      %p110 = scmp.ne.s32.totalorder %s99, %s100
      %p111 = scmp.eq.s32.totalorder %s27, 0
      %p112 = por %p110, %p111
      %p113 = scmp.ne.s32.totalorder %s99, %s100
      %p114 = scmp.eq.s32.totalorder %s28, 3
      %p115 = por %p113, %p114
      %p117 = scmp.ne.s32.totalorder %s100, %s116
      %p118 = scmp.eq.s32.totalorder %s28, 0
      %p119 = por %p117, %p118
      %s120 = ssub.s32 %s30, %s37
      %p121 = scmp.eq.s32.totalorder %s120, 0
      %s123 = sadd.s32 %s122, 1
      %s124 = scalar_select %p121, %s122, %s123
      %p127 = pneg %p121
      %p128 = scmp.eq.s32.totalorder %s22, 3
      %p129 = por %p127, %p128
      %p130 = scmp.ne.s32.totalorder %s122, %s125
      %p131 = scmp.eq.s32.totalorder %s22, 0
      %p132 = por %p130, %p131
      %p133 = scmp.ne.s32.totalorder %s122, %s125
      %p134 = scmp.eq.s32.totalorder %s27, 3
      %p135 = por %p133, %p134
      %p136 = scmp.ne.s32.totalorder %s125, %s126
      %p137 = scmp.eq.s32.totalorder %s27, 0
      %p138 = por %p136, %p137
      %p139 = scmp.ne.s32.totalorder %s125, %s126
      %p140 = scmp.eq.s32.totalorder %s28, 3
      %p141 = por %p139, %p140
      %p143 = scmp.ne.s32.totalorder %s126, %s142
      %p144 = scmp.eq.s32.totalorder %s28, 0
      %p145 = por %p143, %p144
      %s146 = ssub.s32 %s29, %s41
      %p147 = scmp.eq.s32.totalorder %s146, 0
      %s149 = sadd.s32 %s148, 1
      %s150 = scalar_select %p147, %s148, %s149
      %p153 = pneg %p147
      %p154 = scmp.eq.s32.totalorder %s22, 3
      %p155 = por %p153, %p154
      %p156 = scmp.ne.s32.totalorder %s148, %s151
      %p157 = scmp.eq.s32.totalorder %s22, 0
      %p158 = por %p156, %p157
      %p159 = scmp.ne.s32.totalorder %s148, %s151
      %p160 = scmp.eq.s32.totalorder %s27, 3
      %p161 = por %p159, %p160
      %p162 = scmp.ne.s32.totalorder %s151, %s152
      %p163 = scmp.eq.s32.totalorder %s27, 0
      %p164 = por %p162, %p163
      %p165 = scmp.ne.s32.totalorder %s151, %s152
      %p166 = scmp.eq.s32.totalorder %s28, 3
      %p167 = por %p165, %p166
      %p169 = scmp.ne.s32.totalorder %s152, %s168
      %p170 = scmp.eq.s32.totalorder %s28, 0
      %p171 = por %p169, %p170
      %p172 = scmp.le.s32.totalorder 1, %s22
      %p173 = scmp.lt.s32.totalorder %s22, 5
      %p174 = pnand %p172, %p173
      %p175 = pneg %p174
      // Predicated region
      $region9: #{tpu_custom_call.1} parent=5 // pred_check
        _
      $region10: #{tpu_custom_call.1} parent=5 // pred_check_branch
        %177 = sbr.rel (%p174) target = $region12
      $region11: #{tpu_custom_call.1} parent=5 // pred_region
        %s178 = ssub.s32 %s22, 1
      $region12: #{tpu_custom_call.1} parent=5 // pred_fallthru
        _
      %p179 = scmp.lt.s32.totalorder %s22, 4
      // Predicated region
      $region13: #{tpu_custom_call.1} parent=5 // pred_check
        %p180 = pneg %p179
      $region14: #{tpu_custom_call.1} parent=5 // pred_check_branch
        %182 = sbr.rel (%p180) target = $region16
      $region15: #{tpu_custom_call.1} parent=5 // pred_region
        // Predicated region
        $region17: #{tpu_custom_call.1} parent=15 // pred_check
          %p183 = pneg %p54
        $region18: #{tpu_custom_call.1} parent=15 // pred_check_branch
          %185 = sbr.rel (%p183) target = $region20
        $region19: #{tpu_custom_call.1} parent=15 // pred_region
          %s186 = sand.u32 %s44, 1
          %s187 = scalar_lea.sflag [#allocation4], %s186
          %s188 = sand.u32 %s44, 1
          %s189 = smul.addr %s188, 8
          %s190 = scalar_lea.vmem [#allocation3], %s189
          %s192 = ssub.s32 128, 128
          %193 = vsyncadd %s187, %s192
          %s194 = smul.addr %s29, 128
          %s195 = scalar_lea.hbm %s0, %s194
          %s197 = sshll.u32 %s190, 4
          %s198 = int_to_ptr.vmem [resolvable:$true] %s197
          %200 = dma.hbm_to_vmem [thread:$0]  %s195, 128, %s198, %s187
        $region20: #{tpu_custom_call.1} parent=15 // pred_fallthru
          _
        // Predicated region
        $region21: #{tpu_custom_call.1} parent=15 // pred_check
          %p201 = pneg %p80
        $region22: #{tpu_custom_call.1} parent=15 // pred_check_branch
          %203 = sbr.rel (%p201) target = $region24
        $region23: #{tpu_custom_call.1} parent=15 // pred_region
          %s204 = sand.u32 %s22, 1
          %s205 = scalar_lea.sflag [#allocation7], %s204
          %s206 = sand.u32 %s70, 1
          %s207 = smul.addr %s206, 64
          %s208 = scalar_lea.vmem [#allocation6], %s207
          %s210 = ssub.s32 1024, 1024
          %211 = vsyncadd %s205, %s210
          %s212 = smul.addr %s30, 64
          %s213 = scalar_lea.hbm %s1, %s212
          %s214 = sshll.u32 %s208, 4
          %s215 = int_to_ptr.vmem [resolvable:$true] %s214
          %220 = dma.hbm_to_vmem [thread:$0]  %s213, 1024, %s215, %s205, 128, 64, 4
        $region24: #{tpu_custom_call.1} parent=15 // pred_fallthru
          _
        // Predicated region
        $region25: #{tpu_custom_call.1} parent=15 // pred_check
          %p221 = pneg %p106
        $region26: #{tpu_custom_call.1} parent=15 // pred_check_branch
          %223 = sbr.rel (%p221) target = $region28
        $region27: #{tpu_custom_call.1} parent=15 // pred_region
          %s224 = sand.u32 %s22, 1
          %s225 = scalar_lea.sflag [#allocation7], %s224
          %s226 = sand.u32 %s96, 1
          %s227 = smul.addr %s226, 64
          %s228 = scalar_lea.vmem [#allocation8], %s227
          %s230 = ssub.s32 1024, 1024
          %231 = vsyncadd %s225, %s230
          %s232 = smul.addr %s30, 64
          %s233 = scalar_lea.hbm %s2, %s232
          %s234 = sshll.u32 %s228, 4
          %s235 = int_to_ptr.vmem [resolvable:$true] %s234
          %240 = dma.hbm_to_vmem [thread:$0]  %s233, 1024, %s235, %s225, 128, 64, 4
        $region28: #{tpu_custom_call.1} parent=15 // pred_fallthru
          _
        // Predicated region
        $region29: #{tpu_custom_call.1} parent=15 // pred_check
          %p241 = pneg %p132
        $region30: #{tpu_custom_call.1} parent=15 // pred_check_branch
          %243 = sbr.rel (%p241) target = $region32
        $region31: #{tpu_custom_call.1} parent=15 // pred_region
          %s244 = sand.u32 %s122, 1
          %s245 = scalar_lea.sflag [#allocation10], %s244
          %s246 = sand.u32 %s122, 1
          %s247 = smul.addr %s246, 64
          %s248 = scalar_lea.vmem [#allocation9], %s247
          %s249 = smul.u32 16, %s30
          %s251 = ssub.s32 1024, 1024
          %252 = vsyncadd %s245, %s251
          %s253 = smul.addr %s249, 64
          %s254 = scalar_lea.hbm %s3, %s253
          %s255 = sshll.u32 %s248, 4
          %s256 = int_to_ptr.vmem [resolvable:$true] %s255
          %261 = dma.hbm_to_vmem [thread:$0]  %s254, 1024, %s256, %s245, 64, 64, 4
        $region32: #{tpu_custom_call.1} parent=15 // pred_fallthru
          _
      $region16: #{tpu_custom_call.1} parent=5 // pred_fallthru
        _
      %p262 = scmp.le.s32.totalorder 1, %s22
      %p263 = scmp.lt.s32.totalorder %s22, 5
      %p264 = pnand %p262, %p263
      %p265 = pneg %p264
      // Predicated region
      $region33: #{tpu_custom_call.1} parent=5 // pred_check
        _
      $region34: #{tpu_custom_call.1} parent=5 // pred_check_branch
        %267 = sbr.rel (%p264) target = $region36
      $region35: #{tpu_custom_call.1} parent=5 // pred_region
        %s268 = ssub.s32 %s22, 1
        %s269 = sand.u32 %s47, 1
        %s270 = scalar_lea.sflag [#allocation4], %s269
        %s271 = sand.u32 %s47, 1
        %s272 = smul.addr %s271, 8
        %s273 = scalar_lea.vmem [#allocation3], %s272
        // Predicated region
        $region37: #{tpu_custom_call.1} parent=35 // pred_check
          %p274 = pneg %p60
        $region38: #{tpu_custom_call.1} parent=35 // pred_check_branch
          %276 = sbr.rel (%p274) target = $region40
        $region39: #{tpu_custom_call.1} parent=35 // pred_region
          %277 = dma.done %s270, 128
        $region40: #{tpu_custom_call.1} parent=35 // pred_fallthru
          _
        %s278 = sand.u32 %s27, 1
        %s279 = scalar_lea.sflag [#allocation7], %s278
        %s280 = sand.u32 %s73, 1
        %s281 = smul.addr %s280, 64
        %s282 = scalar_lea.vmem [#allocation6], %s281
        // Predicated region
        $region41: #{tpu_custom_call.1} parent=35 // pred_check
          %p283 = pneg %p86
        $region42: #{tpu_custom_call.1} parent=35 // pred_check_branch
          %285 = sbr.rel (%p283) target = $region44
        $region43: #{tpu_custom_call.1} parent=35 // pred_region
          %286 = dma.done %s279, 1024
        $region44: #{tpu_custom_call.1} parent=35 // pred_fallthru
          _
        %s287 = sand.u32 %s27, 1
        %s288 = scalar_lea.sflag [#allocation7], %s287
        %s289 = sand.u32 %s99, 1
        %s290 = smul.addr %s289, 64
        %s291 = scalar_lea.vmem [#allocation8], %s290
        // Predicated region
        $region45: #{tpu_custom_call.1} parent=35 // pred_check
          %p292 = pneg %p112
        $region46: #{tpu_custom_call.1} parent=35 // pred_check_branch
          %294 = sbr.rel (%p292) target = $region48
        $region47: #{tpu_custom_call.1} parent=35 // pred_region
          %295 = dma.done %s288, 1024
        $region48: #{tpu_custom_call.1} parent=35 // pred_fallthru
          _
        %s296 = sand.u32 %s125, 1
        %s297 = scalar_lea.sflag [#allocation10], %s296
        %s298 = sand.u32 %s125, 1
        %s299 = smul.addr %s298, 64
        %s300 = scalar_lea.vmem [#allocation9], %s299
        // Predicated region
        $region49: #{tpu_custom_call.1} parent=35 // pred_check
          %p301 = pneg %p138
        $region50: #{tpu_custom_call.1} parent=35 // pred_check_branch
          %303 = sbr.rel (%p301) target = $region52
        $region51: #{tpu_custom_call.1} parent=35 // pred_region
          %304 = dma.done %s297, 1024
        $region52: #{tpu_custom_call.1} parent=35 // pred_fallthru
          _
        %s305 = sand.u32 %s47, 1
        %s306 = scalar_lea.sflag [#allocation4], %s305
        %s307 = sand.u32 %s47, 1
        %s308 = smul.addr %s307, 8
        %s309 = scalar_lea.vmem [#allocation3], %s308
        %p310 = pneg %p60
        %p311 = pneg %p57
        %s312 = sand.u32 %s27, 1
        %s313 = scalar_lea.sflag [#allocation7], %s312
        %s314 = sand.u32 %s73, 1
        %s315 = smul.addr %s314, 64
        %s316 = scalar_lea.vmem [#allocation6], %s315
        %p317 = pneg %p86
        %p318 = pneg %p83
        %s319 = sand.u32 %s27, 1
        %s320 = scalar_lea.sflag [#allocation7], %s319
        %s321 = sand.u32 %s99, 1
        %s322 = smul.addr %s321, 64
        %s323 = scalar_lea.vmem [#allocation8], %s322
        %p324 = pneg %p112
        %p325 = pneg %p109
        %s326 = sand.u32 %s125, 1
        %s327 = scalar_lea.sflag [#allocation10], %s326
        %s328 = sand.u32 %s125, 1
        %s329 = smul.addr %s328, 64
        %s330 = scalar_lea.vmem [#allocation9], %s329
        %p331 = pneg %p138
        %p332 = pneg %p135
        %p333 = pneg %p164
        %p334 = pneg %p161
        %s335 = sand.u32 %s151, 1
        %s336 = scalar_lea.sflag [#allocation5], %s335
        %s337 = sand.u32 %s151, 1
        %s338 = smul.addr %s337, 8
        %s339 = scalar_lea.vmem [#allocation11], %s338
        %s340 = smul.u32 16, %s32
        %p342 = scmp.eq.s32.totalorder %s32, 0
        // Predicated region
        $region53: #{tpu_custom_call.1} parent=35 // pred_check
          %p343 = pneg %p342
        $region54: #{tpu_custom_call.1} parent=35 // pred_check_branch
          %345 = sbr.rel (%p343) target = $region56
        $region55: #{tpu_custom_call.1} parent=35 // pred_region
          %346 = vst [vmem:[#allocation2] sm:$0xff] 0.0
        $region56: #{tpu_custom_call.1} parent=35 // pred_fallthru
          _
        %v347 = vld [vmem:[%s273] sm:$0xff]
        %v348 = vpack.c.bf16 %v347, %v347
        %v349 = vld [vmem:[%s282] sm:$0xf]
        %v350 = vld [vmem:[%s282 + $0x4] sm:$0xf]
        %v351 = vld [vmem:[%s282 + $0x8] sm:$0xf]
        %v352 = vld [vmem:[%s282 + $0xc] sm:$0xf]
        %v353 = vld [vmem:[%s282 + $0x10] sm:$0xf]
        %v354 = vld [vmem:[%s282 + $0x14] sm:$0xf]
        %v355 = vld [vmem:[%s282 + $0x18] sm:$0xf]
        %v356 = vld [vmem:[%s282 + $0x1c] sm:$0xf]
        %v357 = vld [vmem:[%s282 + $0x20] sm:$0xf]
        %v358 = vld [vmem:[%s282 + $0x24] sm:$0xf]
        %v359 = vld [vmem:[%s282 + $0x28] sm:$0xf]
        %v360 = vld [vmem:[%s282 + $0x2c] sm:$0xf]
        %v361 = vld [vmem:[%s282 + $0x30] sm:$0xf]
        %v362 = vld [vmem:[%s282 + $0x34] sm:$0xf]
        %v363 = vld [vmem:[%s282 + $0x38] sm:$0xf]
        %v364 = vld [vmem:[%s282 + $0x3c] sm:$0xf]
        %v381 = vunpack.c.l.b16 %v349
        %v382 = vunpack.c.l.b16 %v350
        %v383 = vunpack.c.l.b16 %v351
        %v384 = vunpack.c.l.b16 %v352
        %v385 = vunpack.c.l.b16 %v353
        %v386 = vunpack.c.l.b16 %v354
        %v387 = vunpack.c.l.b16 %v355
        %v388 = vunpack.c.l.b16 %v356
        %v389 = vunpack.c.l.b16 %v357
        %v390 = vunpack.c.l.b16 %v358
        %v391 = vunpack.c.l.b16 %v359
        %v392 = vunpack.c.l.b16 %v360
        %v393 = vunpack.c.l.b16 %v361
        %v394 = vunpack.c.l.b16 %v362
        %v395 = vunpack.c.l.b16 %v363
        %v396 = vunpack.c.l.b16 %v364
        %v397 = vpack.c.b16 %v382, %v381
        %v398 = vpack.c.b16 %v384, %v383
        %v399 = vpack.c.b16 %v386, %v385
        %v400 = vpack.c.b16 %v388, %v387
        %v401 = vpack.c.b16 %v390, %v389
        %v402 = vpack.c.b16 %v392, %v391
        %v403 = vpack.c.b16 %v394, %v393
        %v404 = vpack.c.b16 %v396, %v395
        %413 = vmatprep.subr.bf16.mxu0 0
        %414 = vmatpush1.bf16.msra.mxu0 %v397
        %415 = vmatprep.subr.bf16.mxu0 0
        %416 = vmatpush1.bf16.msra.mxu0 %v398
        %417 = vmatprep.subr.bf16.mxu0 0
        %418 = vmatpush1.bf16.msra.mxu0 %v399
        %419 = vmatprep.subr.bf16.mxu0 0
        %420 = vmatpush1.bf16.msra.mxu0 %v400
        %421 = vmatprep.subr.bf16.mxu0 0
        %422 = vmatpush1.bf16.msra.mxu0 %v401
        %423 = vmatprep.subr.bf16.mxu0 0
        %424 = vmatpush1.bf16.msra.mxu0 %v402
        %425 = vmatprep.subr.bf16.mxu0 0
        %426 = vmatpush1.bf16.msra.mxu0 %v403
        %427 = vmatprep.subr.bf16.mxu0 0
        %428 = vmatpush1.bf16.msra.mxu0 %v404
        %429 = vmatprep.subr.bf16.mxu0 0
        %430 = vmatpush1.bf16.msra.mxu0 0
        %431 = vmatprep.subr.bf16.mxu0 0
        %432 = vmatpush1.bf16.msra.mxu0 0
        %433 = vmatprep.subr.bf16.mxu0 0
        %434 = vmatpush1.bf16.msra.mxu0 0
        %435 = vmatprep.subr.bf16.mxu0 0
        %436 = vmatpush1.bf16.msra.mxu0 0
        %437 = vmatprep.subr.bf16.mxu0 0
        %438 = vmatpush1.bf16.msra.mxu0 0
        %439 = vmatprep.subr.bf16.mxu0 0
        %440 = vmatpush1.bf16.msra.mxu0 0
        %441 = vmatprep.subr.bf16.mxu0 0
        %442 = vmatpush1.bf16.msra.mxu0 0
        %443 = vmatprep.subr.bf16.mxu0 0
        %444 = vmatpush1.bf16.msra.mxu0 0
        %445 = vmatprep.mubr.bf16.mxu0 0
        %446 = vmatmul.mubr.bf16.gmra.mrb[0].mxu0 %v348
        %v447 = vpop.f32.mrb[0].mxu0
        %v448 = vadd.f32 0.0, %v447
        %v449 = vpop.f32.mrb[0].mxu0
        %v450 = vpop.f32.mrb[0].mxu0
        %v451 = vpop.f32.mrb[0].mxu0
        %452 = vdwg.mxu0
        %v453 = vld [vmem:[%s291] sm:$0xf]
        %v454 = vld [vmem:[%s291 + $0x4] sm:$0xf]
        %v455 = vld [vmem:[%s291 + $0x8] sm:$0xf]
        %v456 = vld [vmem:[%s291 + $0xc] sm:$0xf]
        %v457 = vld [vmem:[%s291 + $0x10] sm:$0xf]
        %v458 = vld [vmem:[%s291 + $0x14] sm:$0xf]
        %v459 = vld [vmem:[%s291 + $0x18] sm:$0xf]
        %v460 = vld [vmem:[%s291 + $0x1c] sm:$0xf]
        %v461 = vld [vmem:[%s291 + $0x20] sm:$0xf]
        %v462 = vld [vmem:[%s291 + $0x24] sm:$0xf]
        %v463 = vld [vmem:[%s291 + $0x28] sm:$0xf]
        %v464 = vld [vmem:[%s291 + $0x2c] sm:$0xf]
        %v465 = vld [vmem:[%s291 + $0x30] sm:$0xf]
        %v466 = vld [vmem:[%s291 + $0x34] sm:$0xf]
        %v467 = vld [vmem:[%s291 + $0x38] sm:$0xf]
        %v468 = vld [vmem:[%s291 + $0x3c] sm:$0xf]
        %v485 = vunpack.c.l.b16 %v453
        %v486 = vunpack.c.l.b16 %v454
        %v487 = vunpack.c.l.b16 %v455
        %v488 = vunpack.c.l.b16 %v456
        %v489 = vunpack.c.l.b16 %v457
        %v490 = vunpack.c.l.b16 %v458
        %v491 = vunpack.c.l.b16 %v459
        %v492 = vunpack.c.l.b16 %v460
        %v493 = vunpack.c.l.b16 %v461
        %v494 = vunpack.c.l.b16 %v462
        %v495 = vunpack.c.l.b16 %v463
        %v496 = vunpack.c.l.b16 %v464
        %v497 = vunpack.c.l.b16 %v465
        %v498 = vunpack.c.l.b16 %v466
        %v499 = vunpack.c.l.b16 %v467
        %v500 = vunpack.c.l.b16 %v468
        %v501 = vpack.c.b16 %v486, %v485
        %v502 = vpack.c.b16 %v488, %v487
        %v503 = vpack.c.b16 %v490, %v489
        %v504 = vpack.c.b16 %v492, %v491
        %v505 = vpack.c.b16 %v494, %v493
        %v506 = vpack.c.b16 %v496, %v495
        %v507 = vpack.c.b16 %v498, %v497
        %v508 = vpack.c.b16 %v500, %v499
        %517 = vmatprep.subr.bf16.mxu0 0
        %518 = vmatpush1.bf16.msra.mxu0 %v501
        %519 = vmatprep.subr.bf16.mxu0 0
        %520 = vmatpush1.bf16.msra.mxu0 %v502
        %521 = vmatprep.subr.bf16.mxu0 0
        %522 = vmatpush1.bf16.msra.mxu0 %v503
        %523 = vmatprep.subr.bf16.mxu0 0
        %524 = vmatpush1.bf16.msra.mxu0 %v504
        %525 = vmatprep.subr.bf16.mxu0 0
        %526 = vmatpush1.bf16.msra.mxu0 %v505
        %527 = vmatprep.subr.bf16.mxu0 0
        %528 = vmatpush1.bf16.msra.mxu0 %v506
        %529 = vmatprep.subr.bf16.mxu0 0
        %530 = vmatpush1.bf16.msra.mxu0 %v507
        %531 = vmatprep.subr.bf16.mxu0 0
        %532 = vmatpush1.bf16.msra.mxu0 %v508
        %533 = vmatprep.subr.bf16.mxu0 0
        %534 = vmatpush1.bf16.msra.mxu0 0
        %535 = vmatprep.subr.bf16.mxu0 0
        %536 = vmatpush1.bf16.msra.mxu0 0
        %537 = vmatprep.subr.bf16.mxu0 0
        %538 = vmatpush1.bf16.msra.mxu0 0
        %539 = vmatprep.subr.bf16.mxu0 0
        %540 = vmatpush1.bf16.msra.mxu0 0
        %541 = vmatprep.subr.bf16.mxu0 0
        %542 = vmatpush1.bf16.msra.mxu0 0
        %543 = vmatprep.subr.bf16.mxu0 0
        %544 = vmatpush1.bf16.msra.mxu0 0
        %545 = vmatprep.subr.bf16.mxu0 0
        %546 = vmatpush1.bf16.msra.mxu0 0
        %547 = vmatprep.subr.bf16.mxu0 0
        %548 = vmatpush1.bf16.msra.mxu0 0
        %549 = vmatprep.mubr.bf16.mxu0 0
        %550 = vmatmul.mubr.bf16.gmra.mrb[0].mxu0 %v348
        %v551 = vpop.f32.mrb[0].mxu0
        %v552 = vadd.f32 0.0, %v551
        %v553 = vpop.f32.mrb[0].mxu0
        %v554 = vpop.f32.mrb[0].mxu0
        %v555 = vpop.f32.mrb[0].mxu0
        %556 = vdwg.mxu0
        %v557 = vxor.u32 %v448, 2147483648
        %v558 = vmul.f32 %v557, 1.442695
        %v559 = vpow.pop %v558
        %v560 = vadd.f32 %v559, 1.0
        %v561 = vrcp.pop %v560
        %v562 = vmul.f32 1.0, %v561
        %v563 = vmul.f32 %v448, %v562
        %v564 = vmul.f32 %v563, %v552
        %v565 = vpack.c.bf16 %v564, %v564
        %v566 = vld [vmem:[#allocation2] sm:$0xff]
        %v567 = vld [vmem:[%s300] sm:$0xf]
        %v568 = vld [vmem:[%s300 + $0x4] sm:$0xf]
        %v569 = vld [vmem:[%s300 + $0x8] sm:$0xf]
        %v570 = vld [vmem:[%s300 + $0xc] sm:$0xf]
        %v571 = vld [vmem:[%s300 + $0x10] sm:$0xf]
        %v572 = vld [vmem:[%s300 + $0x14] sm:$0xf]
        %v573 = vld [vmem:[%s300 + $0x18] sm:$0xf]
        %v574 = vld [vmem:[%s300 + $0x1c] sm:$0xf]
        %v575 = vld [vmem:[%s300 + $0x20] sm:$0xf]
        %v576 = vld [vmem:[%s300 + $0x24] sm:$0xf]
        %v577 = vld [vmem:[%s300 + $0x28] sm:$0xf]
        %v578 = vld [vmem:[%s300 + $0x2c] sm:$0xf]
        %v579 = vld [vmem:[%s300 + $0x30] sm:$0xf]
        %v580 = vld [vmem:[%s300 + $0x34] sm:$0xf]
        %v581 = vld [vmem:[%s300 + $0x38] sm:$0xf]
        %v582 = vld [vmem:[%s300 + $0x3c] sm:$0xf]
        %v599 = vunpack.c.l.b16 %v567
        %v600 = vunpack.c.l.b16 %v568
        %v601 = vunpack.c.l.b16 %v569
        %v602 = vunpack.c.l.b16 %v570
        %v603 = vunpack.c.l.b16 %v571
        %v604 = vunpack.c.l.b16 %v572
        %v605 = vunpack.c.l.b16 %v573
        %v606 = vunpack.c.l.b16 %v574
        %v607 = vunpack.c.l.b16 %v575
        %v608 = vunpack.c.l.b16 %v576
        %v609 = vunpack.c.l.b16 %v577
        %v610 = vunpack.c.l.b16 %v578
        %v611 = vunpack.c.l.b16 %v579
        %v612 = vunpack.c.l.b16 %v580
        %v613 = vunpack.c.l.b16 %v581
        %v614 = vunpack.c.l.b16 %v582
        %v615 = vpack.c.b16 %v600, %v599
        %v616 = vpack.c.b16 %v602, %v601
        %v617 = vpack.c.b16 %v604, %v603
        %v618 = vpack.c.b16 %v606, %v605
        %v619 = vpack.c.b16 %v608, %v607
        %v620 = vpack.c.b16 %v610, %v609
        %v621 = vpack.c.b16 %v612, %v611
        %v622 = vpack.c.b16 %v614, %v613
        %631 = vmatprep.subr.bf16.mxu0 0
        %632 = vmatpush1.bf16.msra.mxu0 %v615
        %633 = vmatprep.subr.bf16.mxu0 0
        %634 = vmatpush1.bf16.msra.mxu0 %v616
        %635 = vmatprep.subr.bf16.mxu0 0
        %636 = vmatpush1.bf16.msra.mxu0 %v617
        %637 = vmatprep.subr.bf16.mxu0 0
        %638 = vmatpush1.bf16.msra.mxu0 %v618
        %639 = vmatprep.subr.bf16.mxu0 0
        %640 = vmatpush1.bf16.msra.mxu0 %v619
        %641 = vmatprep.subr.bf16.mxu0 0
        %642 = vmatpush1.bf16.msra.mxu0 %v620
        %643 = vmatprep.subr.bf16.mxu0 0
        %644 = vmatpush1.bf16.msra.mxu0 %v621
        %645 = vmatprep.subr.bf16.mxu0 0
        %646 = vmatpush1.bf16.msra.mxu0 %v622
        %647 = vmatprep.subr.bf16.mxu0 0
        %648 = vmatpush1.bf16.msra.mxu0 0
        %649 = vmatprep.subr.bf16.mxu0 0
        %650 = vmatpush1.bf16.msra.mxu0 0
        %651 = vmatprep.subr.bf16.mxu0 0
        %652 = vmatpush1.bf16.msra.mxu0 0
        %653 = vmatprep.subr.bf16.mxu0 0
        %654 = vmatpush1.bf16.msra.mxu0 0
        %655 = vmatprep.subr.bf16.mxu0 0
        %656 = vmatpush1.bf16.msra.mxu0 0
        %657 = vmatprep.subr.bf16.mxu0 0
        %658 = vmatpush1.bf16.msra.mxu0 0
        %659 = vmatprep.subr.bf16.mxu0 0
        %660 = vmatpush1.bf16.msra.mxu0 0
        %661 = vmatprep.subr.bf16.mxu0 0
        %662 = vmatpush1.bf16.msra.mxu0 0
        %663 = vmatprep.mubr.bf16.mxu0 0
        %664 = vmatmul.mubr.bf16.gmra.mrb[0].mxu0 %v565
        %v665 = vpop.f32.mrb[0].mxu0
        %v666 = vadd.f32 0.0, %v665
        %v667 = vpop.f32.mrb[0].mxu0
        %v668 = vpop.f32.mrb[0].mxu0
        %v669 = vpop.f32.mrb[0].mxu0
        %670 = vdwg.mxu0
        %v671 = vadd.f32 %v566, %v666
        %672 = vst [vmem:[#allocation2] sm:$0xff] %v671
        %p673 = scmp.eq.s32.totalorder %s32, 1
        // Predicated region
        $region57: #{tpu_custom_call.1} parent=35 // pred_check
          %p674 = pneg %p673
        $region58: #{tpu_custom_call.1} parent=35 // pred_check_branch
          %676 = sbr.rel (%p674) target = $region60
        $region59: #{tpu_custom_call.1} parent=35 // pred_region
          %v677 = vld [vmem:[#allocation2] sm:$0xff]
          %678 = vst [vmem:[%s339] sm:$0xff] %v677
        $region60: #{tpu_custom_call.1} parent=35 // pred_fallthru
          _
        %s679 = sand.u32 %s151, 1
        %s680 = scalar_lea.sflag [#allocation5], %s679
        %s681 = sand.u32 %s151, 1
        %s682 = smul.addr %s681, 8
        %s683 = scalar_lea.vmem [#allocation11], %s682
        // Predicated region
        $region61: #{tpu_custom_call.1} parent=35 // pred_check
          %p684 = pneg %p161
        $region62: #{tpu_custom_call.1} parent=35 // pred_check_branch
          %686 = sbr.rel (%p684) target = $region64
        $region63: #{tpu_custom_call.1} parent=35 // pred_region
          %s688 = ssub.s32 128, 128
          %689 = vsyncadd %s680, %s688
          %s690 = smul.addr %s31, 128
          %s691 = scalar_lea.hbm %s4, %s690
          %s693 = sshll.u32 %s683, 4
          %s694 = int_to_ptr.vmem [resolvable:$true] %s693
          %696 = dma.vmem_to_hbm [thread:$0]  %s694, 128, %s691, %s680
        $region64: #{tpu_custom_call.1} parent=35 // pred_fallthru
          _
      $region36: #{tpu_custom_call.1} parent=5 // pred_fallthru
        _
      %p697 = scmp.le.s32.totalorder 2, %s22
      // Predicated region
      $region65: #{tpu_custom_call.1} parent=5 // pred_check
        %p698 = pneg %p697
      $region66: #{tpu_custom_call.1} parent=5 // pred_check_branch
        %700 = sbr.rel (%p698) target = $region68
      $region67: #{tpu_custom_call.1} parent=5 // pred_region
        %s701 = ssub.s32 %s22, 2
        // Predicated region
        $region69: #{tpu_custom_call.1} parent=67 // pred_check
          %p702 = pneg %p167
        $region70: #{tpu_custom_call.1} parent=67 // pred_check_branch
          %704 = sbr.rel (%p702) target = $region72
        $region71: #{tpu_custom_call.1} parent=67 // pred_region
          %s705 = sand.u32 %s152, 1
          %s706 = scalar_lea.sflag [#allocation5], %s705
          %s707 = sand.u32 %s152, 1
          %s708 = smul.addr %s707, 8
          %s709 = scalar_lea.vmem [#allocation11], %s708
          %710 = dma.done %s706, 128
        $region72: #{tpu_custom_call.1} parent=67 // pred_fallthru
          _
      $region68: #{tpu_custom_call.1} parent=5 // pred_fallthru
        _
    $region6: #{tpu_custom_call.1} parent=1 // loop_footer
      %s26 = sadd.s32 1, %s22
    $region7: #{tpu_custom_call.1} parent=1 // loop_footer_branch
      %21 = sbr.rel target = $region3
    $region8: #{tpu_custom_call.1} parent=1 // loop_exit
      _
    %711 = vsyncpa [#allocation4], 1
    %s712 = scalar_lea.sflag [#allocation4], 1
    %713 = vsyncpa %s712, 1
    %714 = vsyncpa [#allocation7], 1
    %s715 = scalar_lea.sflag [#allocation7], 1
    %716 = vsyncpa %s715, 1
    %717 = vsyncpa [#allocation10], 1
    %s718 = scalar_lea.sflag [#allocation10], 1
    %719 = vsyncpa %s718, 1
    %720 = vsyncpa [#allocation5], 1
    %s721 = scalar_lea.sflag [#allocation5], 1
    %722 = vsyncpa %s721, 1

</llo_original>
